<compile_context>
chip_gen: v7x
topology: tpu7x:2x2x1
jax: 0.10.0
libtpu: 0.0.40
codegen_flags: <defaults>
</compile_context>

<pallas_src>
import functools

import jax
import jax.numpy as jnp
from jax.experimental import pallas as pl
from jax.experimental.pallas import tpu as pltpu


def _gau_kernel(x_ref, o_ref, *, compute_dtype, approx_recip):
    x = x_ref[...].astype(compute_dtype)
    # tanh(x) * sigmoid(x) rewritten via u = tanh(x/2):
    #   tanh(x)    = 2u / (1 + u^2)
    #   sigmoid(x) = (1 + u) / 2
    #   product    = u * (1 + u) / (1 + u^2)
    # One EUP transcendental; u in (-1, 1) so the denominator is in [1, 2]
    # and the reciprocal is well-conditioned for all x.
    u = jnp.tanh(x * 0.5)
    y = u * (1.0 + u) * pl.reciprocal(1.0 + u * u, approx=approx_recip)
    o_ref[...] = y.astype(o_ref.dtype)


def _gau_2d(x2d, target_block_bytes):
    """Run the gated-activation kernel on a lane-dense (rows, lanes) slab."""
    rows, lanes = x2d.shape
    dtype = x2d.dtype
    itemsize = jnp.dtype(dtype).itemsize
    # Sublane packing granule: 8 rows for 4-byte, 16 for 2-byte, 32 for 1-byte.
    row_granule = {4: 8, 2: 16, 1: 32}.get(itemsize, 8)

    # bf16 math is native on v6e/v7x VPU/EUP (halves VALU + VMEM pressure);
    # everything else computes in f32 (safe on every generation, incl. v5e).
    if dtype == jnp.bfloat16:
        compute_dtype = jnp.bfloat16
        approx_recip = True   # EUP vrcp; error << bf16 ulp, frees VALU slots.
    else:
        compute_dtype = jnp.float32
        approx_recip = False  # keep exact reciprocal on the f32 path.

    block_bytes = target_block_bytes
    if itemsize < 4 and compute_dtype == jnp.float32:
        # Budget VMEM for the f32-widened block-sized intermediates.
        block_bytes //= 2

    block_rows = max(row_granule, block_bytes // (lanes * itemsize))
    block_rows = (block_rows // row_granule) * row_granule

    # Keep the grid >= 2 steps for anything bigger than ~2 MiB so
    # dimension_semantics=("parallel",) can shard across v7x's 2 TensorCores.
    total_bytes = rows * lanes * itemsize
    if total_bytes > 2 * 1024 * 1024 and rows >= 2 * row_granule:
        half_rows = max(row_granule, ((rows // 2) // row_granule) * row_granule)
        block_rows = min(block_rows, half_rows)

    if block_rows >= rows:
        block_rows = rows  # single full-array block (full dims always legal)

    grid = (pl.cdiv(rows, block_rows),)
    n = rows * lanes

    kernel = functools.partial(
        _gau_kernel, compute_dtype=compute_dtype, approx_recip=approx_recip
    )

    return pl.pallas_call(
        kernel,
        out_shape=jax.ShapeDtypeStruct((rows, lanes), dtype),
        grid=grid,
        in_specs=[pl.BlockSpec((block_rows, lanes), lambda i: (i, 0))],
        out_specs=pl.BlockSpec((block_rows, lanes), lambda i: (i, 0)),
        compiler_params=pltpu.CompilerParams(
            dimension_semantics=("parallel",),
            # 4 MiB blocks: 2 in-bufs + 2 out-bufs = 16 MiB, plus block-sized
            # compute temporaries; 48 MiB covers that with headroom and still
            # fits v7x's 64 MiB physical VMEM (v5e/v6e have 128 MiB).
            vmem_limit_bytes=48 * 1024 * 1024,
        ),
        cost_estimate=pl.CostEstimate(
            flops=6 * n,
            transcendentals=n,            # one tanh per element after rewrite
            bytes_accessed=2 * n * itemsize,
        ),
    )(x2d)


def gated_activation_unit(x, *, target_block_bytes=4 * 1024 * 1024):
    """Elementwise tanh(x) * sigmoid(x) via a Pallas TPU kernel.

    Accepts any shape / float dtype; internally flattens to a lane-dense
    (rows, lanes) slab and streams large blocks through VMEM.
    """
    orig_shape = x.shape
    dtype = x.dtype
    n = x.size
    if n == 0:
        return x
    x_flat = x.reshape(-1)

    # Widest lane dim (multiple of 128) that divides n -> no pad/copy at all.
    lanes = next((w for w in (1024, 512, 256, 128) if n % w == 0), None)
    if lanes is not None:
        out2d = _gau_2d(x_flat.reshape(n // lanes, lanes), target_block_bytes)
        return out2d.reshape(orig_shape)

    # Non-128-divisible size: run the kernel on the largest 128-divisible
    # prefix and compute the <128-element tail with plain jnp (avoids the
    # full-tensor pad + slice HBM passes of a zero-pad fallback).
    n_main = (n // 128) * 128
    tail = x_flat[n_main:]
    y_tail = (jnp.tanh(tail) * jax.nn.sigmoid(tail)).astype(dtype)
    if n_main == 0:
        return y_tail.reshape(orig_shape)
    y_main = _gau_2d(x_flat[:n_main].reshape(n_main // 128, 128),
                     target_block_bytes)
    return jnp.concatenate([y_main.reshape(-1), y_tail]).reshape(orig_shape)


if __name__ == "__main__":
    key = jax.random.PRNGKey(0)

    # NCHW input, matching the PyTorch module's conv-style usage.
    x = jax.random.normal(key, (2, 4, 16, 16), dtype=jnp.float32)
    y = jax.block_until_ready(gated_activation_unit(x))
    y_ref = jnp.tanh(x) * jax.nn.sigmoid(x)
    assert y.shape == x.shape and y.dtype == x.dtype
    assert jnp.max(jnp.abs(y - y_ref)) < 1e-5

    # Also exercise the non-128-divisible (prefix + jnp tail) path.
    x2 = jax.random.normal(jax.random.PRNGKey(1), (2, 3, 7, 11),
                           dtype=jnp.float32)
    y2 = jax.block_until_ready(gated_activation_unit(x2))
    y2_ref = jnp.tanh(x2) * jax.nn.sigmoid(x2)
    assert y2.shape == x2.shape and y2.dtype == x2.dtype
    assert jnp.max(jnp.abs(y2 - y2_ref)) < 1e-5

    print("KERNEL_OK")
</pallas_src>

<mosaic_0001>
module attributes {stable_mosaic.version = 11 : i64} {
  func.func @_gau_kernel(%arg0: i32, %arg1: memref<2x1024xf32, #tpu.memory_space<vmem>>, %arg2: memref<2x1024xf32, #tpu.memory_space<vmem>>) attributes {dimension_semantics = [#tpu.dimension_semantics<parallel>], iteration_bounds = array<i64: 1>, scalar_prefetch = 0 : i64, scratch_operands = 0 : i64, tpu.core_type = #tpu.core_type<tc>, window_params = [{transform_indices = @transform_0, window_bounds = array<i64: 2, 1024>}, {transform_indices = @transform_1, window_bounds = array<i64: 2, 1024>}]} {
    %c0 = arith.constant 0 : index
    %c0_0 = arith.constant 0 : index
    %0 = vector.load %arg1[%c0, %c0_0] : memref<2x1024xf32, #tpu.memory_space<vmem>>, vector<2x1024xf32>
    %cst = arith.constant 5.000000e-01 : f32
    %1 = vector.broadcast %cst : f32 to vector<2x1024xf32>
    %2 = arith.mulf %0, %1 : vector<2x1024xf32>
    %3 = math.tanh %2 : vector<2x1024xf32>
    %cst_1 = arith.constant 1.000000e+00 : f32
    %4 = vector.broadcast %cst_1 : f32 to vector<2x1024xf32>
    %5 = arith.addf %4, %3 : vector<2x1024xf32>
    %6 = arith.mulf %3, %5 : vector<2x1024xf32>
    %7 = arith.mulf %3, %3 : vector<2x1024xf32>
    %cst_2 = arith.constant 1.000000e+00 : f32
    %8 = vector.broadcast %cst_2 : f32 to vector<2x1024xf32>
    %9 = arith.addf %8, %7 : vector<2x1024xf32>
    %10 = tpu.reciprocal %9 : vector<2x1024xf32> -> vector<2x1024xf32>
    %11 = arith.mulf %6, %10 : vector<2x1024xf32>
    %c0_3 = arith.constant 0 : index
    %c0_4 = arith.constant 0 : index
    %12 = vector.load %arg2[%c0_3, %c0_4] : memref<2x1024xf32, #tpu.memory_space<vmem>>, vector<2x1024xf32>
    tpu.vector_store %arg2[%c0_3, %c0_4], %11 {strides = array<i32>} : memref<2x1024xf32, #tpu.memory_space<vmem>>, vector<2x1024xf32>,
    return
  }
  func.func @transform_0(%arg0: i32) -> (i32, i32) {
    %c0_i32 = arith.constant 0 : i32
    %c0_i32_0 = arith.constant 0 : i32
    return %arg0, %c0_i32 : i32, i32
  }
  func.func @transform_1(%arg0: i32) -> (i32, i32) {
    %c0_i32 = arith.constant 0 : i32
    %c0_i32_0 = arith.constant 0 : i32
    return %arg0, %c0_i32 : i32, i32
  }
}

</mosaic_0001>

<llo_original>
// kernel: tpu_custom_call.1
$region0: #{tpu_custom_call.1}
  #allocation0 [shape = 'u32[]', space=smem, size = 0x4, offset = 0x4, fixed_abs, tag = 'smem constant byte address 0x4 - core index']
  #allocation1 [shape = 'u32[144,128]{1,0:T(1,128)}', space=vmem, size = 0x12000, scoped, tag = 'internal scratch']
  %s0 = inlined_call_operand.hbm [shape: f32[2,1024], index: 0, kind: input, shape index: {}]
  %s1 = inlined_call_operand.hbm [shape: f32[2,1024], index: 1, kind: output, shape index: {}]
  %s2 = sld [smem:[#allocation0]]
  $region18: #{tpu_custom_call.1} parent=0
    _
  %s4 = ssub.s32 1, %s2
  %s5 = scalar_select 0, %s4, %s2
  $region1: #{tpu_custom_call.1} parent=0
    #allocation2 [shape = 'u8[8192]{0}', space=vmem, size = 0x2000, scoped, tag = 'input window, operand 0, single buffered']
    #allocation3 [shape = 's32[1]{0}', space=sflag, size = 0x4, scoped, tag = 'scoped memory for tpu_custom_call.1']
    #allocation4 [shape = 's32[1]{0}', space=sflag, size = 0x4, scoped, tag = 'scoped memory for tpu_custom_call.1']
    #allocation5 [shape = 'u8[8192]{0}', space=vmem, size = 0x2000, scoped, tag = 'output window, operand 0, single buffered']
    %6 = vsyncpa [#allocation3], 0
    %7 = vsyncpa [#allocation4], 0
    // Predicated region
    $region2: #{tpu_custom_call.1} parent=1 // pred_check
      _
    $region3: #{tpu_custom_call.1} parent=1 // pred_check_branch
      %9 = sbr.rel (0) target = $region5
    $region4: #{tpu_custom_call.1} parent=1 // pred_region
      %s11 = ssub.s32 256, 256
      %12 = vsyncadd [#allocation3], %s11
      %s14 = sshll.u32 [#allocation2], 4
      %s15 = int_to_ptr.vmem [resolvable:$true] %s14
      %17 = dma.hbm_to_vmem [thread:$0]  %s0, 256, %s15, [#allocation3]
    $region5: #{tpu_custom_call.1} parent=1 // pred_fallthru
      _
    // Predicated region
    $region6: #{tpu_custom_call.1} parent=1 // pred_check
      _
    $region7: #{tpu_custom_call.1} parent=1 // pred_check_branch
      %19 = sbr.rel (0) target = $region9
    $region8: #{tpu_custom_call.1} parent=1 // pred_region
      %20 = dma.done [#allocation3], 256
    $region9: #{tpu_custom_call.1} parent=1 // pred_fallthru
      _
    %v21 = vld [vmem:[#allocation2] sm:$0xff]
    %v22 = vld [vmem:[#allocation2 + $0x8] sm:$0xff]
    %v23 = vmul.f32 %v21, 0.5
    %v24 = vmul.f32 %v22, 0.5
    %v25 = vtanh.pop %v23
    %v26 = vtanh.pop %v24
    %v27 = vadd.f32 %v25, 1.0
    %v28 = vadd.f32 %v26, 1.0
    %v29 = vmul.f32 %v25, %v27
    %v30 = vmul.f32 %v26, %v28
    %v31 = vmul.f32 %v25, %v25
    %v32 = vmul.f32 %v26, %v26
    %v33 = vadd.f32 %v31, 1.0
    %v34 = vadd.f32 %v32, 1.0
    %v35 = vrcp.pop %v33
    %v36 = vrcp.pop %v34
    %v37 = vmul.f32 %v29, %v35
    %v38 = vmul.f32 %v30, %v36
    %39 = vst [vmem:[#allocation5] sm:$0xff] %v37
    %40 = vst [vmem:[#allocation5 + $0x8] sm:$0xff] %v38
    // Predicated region
    $region10: #{tpu_custom_call.1} parent=1 // pred_check
      _
    $region11: #{tpu_custom_call.1} parent=1 // pred_check_branch
      %42 = sbr.rel (0) target = $region13
    $region12: #{tpu_custom_call.1} parent=1 // pred_region
      %s44 = ssub.s32 256, 256
      %45 = vsyncadd [#allocation4], %s44
      %s47 = sshll.u32 [#allocation5], 4
      %s48 = int_to_ptr.vmem [resolvable:$true] %s47
      %50 = dma.vmem_to_hbm [thread:$0]  %s48, 256, %s1, [#allocation4]
    $region13: #{tpu_custom_call.1} parent=1 // pred_fallthru
      _
    // Predicated region
    $region14: #{tpu_custom_call.1} parent=1 // pred_check
      _
    $region15: #{tpu_custom_call.1} parent=1 // pred_check_branch
      %52 = sbr.rel (0) target = $region17
    $region16: #{tpu_custom_call.1} parent=1 // pred_region
      %53 = dma.done [#allocation4], 256
    $region17: #{tpu_custom_call.1} parent=1 // pred_fallthru
      _
    %54 = vsyncpa [#allocation3], 1
    %55 = vsyncpa [#allocation4], 1

</llo_original>
